<compile_context>
chip_gen: v7x
topology: tpu7x:2x2x1
jax: 0.10.0
libtpu: 0.0.40
codegen_flags: <defaults>
</compile_context>

<pallas_src>
import math

import jax
import jax.numpy as jnp
from jax.experimental import pallas as pl
from jax.experimental.pallas import tpu as pltpu


def _round_up(x, m):
    return ((x + m - 1) // m) * m


def _pad2d(m, rows, cols, dtype=None, always_cast=False):
    """Zero-pad `m` to (rows, cols).  When a padding copy happens anyway (or
    always_cast=True) the dtype cast is folded into it; otherwise the dtype is
    left alone so no extra HBM pass is emitted (the kernel casts on the VPU)."""
    pr, pc = rows - m.shape[0], cols - m.shape[1]
    if dtype is not None and (always_cast or pr > 0 or pc > 0):
        m = m.astype(dtype)
    if pr > 0 or pc > 0:
        m = jnp.pad(m, ((0, pr), (0, pc)))
    return m


# ---------------------------------------------------------------------------
# Kernels
# ---------------------------------------------------------------------------

def _support_kernel(x_ref, w_ref, o_ref):
    """One row-block of support = x @ W (bf16 MXU inputs, f32 accumulate)."""
    o_ref[...] = jnp.dot(
        x_ref[...].astype(jnp.bfloat16), w_ref[...],
        preferred_element_type=jnp.float32).astype(o_ref.dtype)


def _make_gcn_kernel(has_bias: bool, single_k: bool, fused: bool):
    """out[i] = sum_k adj[i, k] @ support[k] (+ bias).

    fused=True : inputs (adj_tile, x_block, W)     -- support recomputed on the
                 fly from the VMEM-resident weight (no HBM round-trip).
    fused=False: inputs (adj_tile, support_block)  -- support precomputed.
    single_k   : whole contraction in one grid step -> no accumulator scratch,
                 no pl.when init/finalize.
    """
    n_in = 3 if fused else 2

    def _partial(in_refs):
        adj = in_refs[0][...].astype(jnp.bfloat16)
        if fused:
            sup = jnp.dot(in_refs[1][...].astype(jnp.bfloat16), in_refs[2][...],
                          preferred_element_type=jnp.float32).astype(jnp.bfloat16)
        else:
            sup = in_refs[1][...]
        return jnp.dot(adj, sup, preferred_element_type=jnp.float32)

    if single_k:
        def kernel(*refs):
            in_refs, rest = refs[:n_in], refs[n_in:]
            if has_bias:
                bias_ref, o_ref = rest
            else:
                (o_ref,) = rest
            out = _partial(in_refs)
            if has_bias:
                out = out + bias_ref[...]          # bias_ref is (1, F_out_p)
            o_ref[...] = out.astype(o_ref.dtype)
    else:
        def kernel(*refs):
            in_refs, rest = refs[:n_in], refs[n_in:]
            if has_bias:
                bias_ref, o_ref, acc_ref = rest
            else:
                o_ref, acc_ref = rest
            k = pl.program_id(1)

            @pl.when(k == 0)
            def _():
                acc_ref[...] = jnp.zeros_like(acc_ref)

            acc_ref[...] += _partial(in_refs)

            @pl.when(k == pl.num_programs(1) - 1)
            def _():
                out = acc_ref[...]
                if has_bias:
                    out = out + bias_ref[...]
                o_ref[...] = out.astype(o_ref.dtype)

    return kernel


# ---------------------------------------------------------------------------
# Wrappers
# ---------------------------------------------------------------------------

def _vmem_limit(est_bytes):
    return int(min(64 * 1024 * 1024, max(32 * 1024 * 1024, 2 * est_bytes)))


def _support_matmul(x, weight, n_pad, f_in_p, f_out_p):
    """support = x @ weight as a zero-padded (n_pad, f_out_p) bf16 array."""
    x_p = _pad2d(x, n_pad, f_in_p)                           # dtype kept unless padded
    w_p = _pad2d(weight, f_in_p, f_out_p, jnp.bfloat16, always_cast=True)

    tms = max(t for t in (512, 256, 128) if n_pad % t == 0)
    est = (2 * tms * f_in_p * x_p.dtype.itemsize
           + 2 * f_in_p * f_out_p * 2
           + 2 * tms * f_out_p * 2)

    return pl.pallas_call(
        _support_kernel,
        out_shape=jax.ShapeDtypeStruct((n_pad, f_out_p), jnp.bfloat16),
        grid_spec=pltpu.PrefetchScalarGridSpec(
            num_scalar_prefetch=0,
            grid=(n_pad // tms,),
            in_specs=[pl.BlockSpec((tms, f_in_p), lambda i: (i, 0)),
                      pl.BlockSpec((f_in_p, f_out_p), lambda i: (0, 0))],
            out_specs=pl.BlockSpec((tms, f_out_p), lambda i: (i, 0)),
        ),
        compiler_params=pltpu.CompilerParams(
            dimension_semantics=("parallel",),
            vmem_limit_bytes=_vmem_limit(est)),
    )(x_p, w_p)


def gcn_forward(x, adj, weight, bias=None, *, tm=None, tk=None):
    """output = adj @ (x @ weight) (+ bias)."""
    N, F_in = x.shape
    assert adj.shape == (N, N), (adj.shape, N)
    F_in_w, F_out = weight.shape
    assert F_in_w == F_in, (weight.shape, F_in)

    f_in_p = _round_up(F_in, 128)
    f_out_p = _round_up(F_out, 128)
    n_pad = _round_up(N, 128)

    # Contraction tile (largest 128-multiple dividing n_pad).
    if tk is None:
        tk = max(t for t in (512, 256, 128) if n_pad % t == 0)
    # Row-block tile: prefer a parallel-axis extent >= 2 (keep 2 TCs busy on
    # v7x) without dropping below 128.
    if tm is None:
        cands = [t for t in (512, 256, 128)
                 if n_pad % t == 0 and n_pad // t >= 2]
        tm = cands[0] if cands else max(
            t for t in (512, 256, 128) if n_pad % t == 0)
    num_i, num_k = n_pad // tm, n_pad // tk

    # adj: pad (and fold the bf16 cast into that copy) only if needed;
    # otherwise stream f32 and cast in-kernel.
    adj_p = _pad2d(adj, n_pad, n_pad, jnp.bfloat16)

    has_bias = bias is not None
    single_k = num_k == 1
    # Fuse x@W into the aggregation kernel only when the per-step recompute /
    # x re-streaming is no wider than the adj row-block (hidden under adj HBM
    # stream); otherwise precompute support once.
    fused = (num_i == 1) or (f_in_p <= tm)

    kernel = _make_gcn_kernel(has_bias, single_k, fused)

    in_specs = [pl.BlockSpec((tm, tk), lambda i, k: (i, k))]      # adj tile
    args = [adj_p]
    est = 2 * tm * tk * adj_p.dtype.itemsize

    if fused:
        x_p = _pad2d(x, n_pad, f_in_p, jnp.bfloat16)
        w_p = _pad2d(weight, f_in_p, f_out_p, jnp.bfloat16, always_cast=True)
        in_specs += [pl.BlockSpec((tk, f_in_p), lambda i, k: (k, 0)),
                     pl.BlockSpec((f_in_p, f_out_p), lambda i, k: (0, 0))]
        args += [x_p, w_p]
        est += 2 * tk * f_in_p * x_p.dtype.itemsize + 2 * f_in_p * f_out_p * 2
    else:
        sup = _support_matmul(x, weight, n_pad, f_in_p, f_out_p)
        in_specs.append(pl.BlockSpec((tk, f_out_p), lambda i, k: (k, 0)))
        args.append(sup)
        est += 2 * tk * f_out_p * 2

    if has_bias:
        bias_p = _pad2d(bias.reshape(1, F_out), 1, f_out_p,
                        jnp.float32, always_cast=True)
        in_specs.append(pl.BlockSpec((1, f_out_p), lambda i, k: (0, 0)))
        args.append(bias_p)
        est += 2 * f_out_p * 4

    scratch = [] if single_k else [pltpu.VMEM((tm, f_out_p), jnp.float32)]
    est += 2 * tm * f_out_p * 4 + (0 if single_k else tm * f_out_p * 4)

    out = pl.pallas_call(
        kernel,
        out_shape=jax.ShapeDtypeStruct((n_pad, f_out_p), jnp.float32),
        grid_spec=pltpu.PrefetchScalarGridSpec(
            num_scalar_prefetch=0,
            grid=(num_i, num_k),
            in_specs=in_specs,
            out_specs=pl.BlockSpec((tm, f_out_p), lambda i, k: (i, 0)),
            scratch_shapes=scratch,
        ),
        compiler_params=pltpu.CompilerParams(
            dimension_semantics=("parallel", "arbitrary"),
            vmem_limit_bytes=_vmem_limit(est)),
    )(*args)

    return out[:N, :F_out]


@jax.jit
def _gcn_apply_bias(x, adj, weight, bias):
    return gcn_forward(x, adj, weight, bias)


@jax.jit
def _gcn_apply_nobias(x, adj, weight):
    return gcn_forward(x, adj, weight, None)


class GraphConvolution:
    """JAX/Pallas port of the PyTorch GraphConvolution module (forward only)."""

    def __init__(self, in_features, out_features, with_bias=True, key=None):
        self.in_features = in_features
        self.out_features = out_features
        key = key if key is not None else jax.random.PRNGKey(0)
        wk, bk = jax.random.split(key)
        stdv = 1.0 / math.sqrt(out_features)
        # Same distribution as reset_parameters() (uniform +-1/sqrt(F_out)).
        self.weight = jax.random.uniform(
            wk, (in_features, out_features), jnp.float32, -stdv, stdv)
        self.bias = (jax.random.uniform(bk, (out_features,), jnp.float32,
                                        -stdv, stdv) if with_bias else None)

    def __call__(self, x, adj):
        # TODO(synk): sparse (torch.spmm) inputs are evaluated densely here.
        if self.bias is not None:
            return _gcn_apply_bias(x, adj, self.weight, self.bias)
        return _gcn_apply_nobias(x, adj, self.weight)


if __name__ == "__main__":
    root = jax.random.PRNGKey(0)

    def make_case(key, n, f_in, f_out, with_bias):
        kx, ka, kp = jax.random.split(key, 3)
        x = jax.random.normal(kx, (n, f_in), jnp.float32)
        a = jax.random.uniform(ka, (n, n), jnp.float32)
        adj = (a + a.T) * 0.5 + jnp.eye(n, dtype=jnp.float32)
        adj = adj / jnp.sum(adj, axis=1, keepdims=True)   # row-normalized
        layer = GraphConvolution(f_in, f_out, with_bias=with_bias, key=kp)
        return layer, x, adj

    keys = jax.random.split(root, 3)
    # (N, F_in, F_out, bias) -- covers fused single-step, fused multi-step,
    # and precomputed-support multi-step kernel paths.
    cases = [(128, 64, 32, True),
             (384, 64, 200, False),
             (640, 300, 72, True)]

    for key, (n, f_in, f_out, wb) in zip(keys, cases):
        layer, x, adj = make_case(key, n, f_in, f_out, wb)
        out = jax.block_until_ready(layer(x, adj))

        # Reference in plain JAX f32; kernel uses bf16 MXU inputs.
        ref = adj @ (x @ layer.weight)
        if layer.bias is not None:
            ref = ref + layer.bias
        assert out.shape == (n, f_out), out.shape
        max_err = float(jnp.max(jnp.abs(out - ref)))
        assert jnp.allclose(out, ref, atol=3e-2, rtol=3e-2), \
            (n, f_in, f_out, max_err)

    print("KERNEL_OK")
</pallas_src>

<mosaic_0001>
module attributes {stable_mosaic.version = 11 : i64} {
  func.func @kernel(%arg0: i32, %arg1: i32, %arg2: memref<128x128xf32, #tpu.memory_space<vmem>>, %arg3: memref<128x128xbf16, #tpu.memory_space<vmem>>, %arg4: memref<128x128xbf16, #tpu.memory_space<vmem>>, %arg5: memref<1x128xf32, #tpu.memory_space<vmem>>, %arg6: memref<128x128xf32, #tpu.memory_space<vmem>>) attributes {dimension_semantics = [#tpu.dimension_semantics<parallel>, #tpu.dimension_semantics<arbitrary>], iteration_bounds = array<i64: 1, 1>, scalar_prefetch = 0 : i64, scratch_operands = 0 : i64, tpu.core_type = #tpu.core_type<tc>, window_params = [{transform_indices = @transform_0, window_bounds = array<i64: 128, 128>}, {transform_indices = @transform_1, window_bounds = array<i64: 128, 128>}, {pipeline_mode = #tpu.pipeline_mode<synchronous>, transform_indices = @transform_2, window_bounds = array<i64: 128, 128>}, {pipeline_mode = #tpu.pipeline_mode<synchronous>, transform_indices = @transform_3, window_bounds = array<i64: 1, 128>}, {transform_indices = @transform_4, window_bounds = array<i64: 128, 128>}]} {
    %c0 = arith.constant 0 : index
    %c0_0 = arith.constant 0 : index
    %0 = vector.load %arg2[%c0, %c0_0] : memref<128x128xf32, #tpu.memory_space<vmem>>, vector<128x128xf32>
    %1 = arith.truncf %0 : vector<128x128xf32> to vector<128x128xbf16>
    %c0_1 = arith.constant 0 : index
    %c0_2 = arith.constant 0 : index
    %2 = vector.load %arg3[%c0_1, %c0_2] : memref<128x128xbf16, #tpu.memory_space<vmem>>, vector<128x128xbf16>
    %c0_3 = arith.constant 0 : index
    %c0_4 = arith.constant 0 : index
    %3 = vector.load %arg4[%c0_3, %c0_4] : memref<128x128xbf16, #tpu.memory_space<vmem>>, vector<128x128xbf16>
    %cst = arith.constant dense<0.000000e+00> : vector<128x128xf32>
    %4 = tpu.matmul %2, %3, %cst {dimension_numbers = #tpu.dot_dimension_numbers<[1], [0], [0], [1], [0, 0, 1, 1], [], []>} : vector<128x128xbf16>, vector<128x128xbf16>, vector<128x128xf32> -> vector<128x128xf32>
    %5 = arith.truncf %4 : vector<128x128xf32> to vector<128x128xbf16>
    %cst_5 = arith.constant dense<0.000000e+00> : vector<128x128xf32>
    %6 = tpu.matmul %1, %5, %cst_5 {dimension_numbers = #tpu.dot_dimension_numbers<[1], [0], [0], [1], [0, 0, 1, 1], [], []>} : vector<128x128xbf16>, vector<128x128xbf16>, vector<128x128xf32> -> vector<128x128xf32>
    %c0_6 = arith.constant 0 : index
    %c0_7 = arith.constant 0 : index
    %7 = vector.load %arg5[%c0_6, %c0_7] : memref<1x128xf32, #tpu.memory_space<vmem>>, vector<1x128xf32>
    %8 = vector.broadcast %7 : vector<1x128xf32> to vector<128x128xf32>
    %9 = arith.addf %6, %8 : vector<128x128xf32>
    %c0_8 = arith.constant 0 : index
    %c0_9 = arith.constant 0 : index
    %10 = vector.load %arg6[%c0_8, %c0_9] : memref<128x128xf32, #tpu.memory_space<vmem>>, vector<128x128xf32>
    tpu.vector_store %arg6[%c0_8, %c0_9], %9 {strides = array<i32>} : memref<128x128xf32, #tpu.memory_space<vmem>>, vector<128x128xf32>,
    return
  }
  func.func @transform_0(%arg0: i32, %arg1: i32) -> (i32, i32) {
    %c0_i32 = arith.constant 0 : i32
    return %arg0, %arg1 : i32, i32
  }
  func.func @transform_1(%arg0: i32, %arg1: i32) -> (i32, i32) {
    %c0_i32 = arith.constant 0 : i32
    %c0_i32_0 = arith.constant 0 : i32
    return %arg1, %c0_i32 : i32, i32
  }
  func.func @transform_2(%arg0: i32, %arg1: i32) -> (i32, i32) {
    %c0_i32 = arith.constant 0 : i32
    %c0_i32_0 = arith.constant 0 : i32
    %c0_i32_1 = arith.constant 0 : i32
    return %c0_i32, %c0_i32_0 : i32, i32
  }
  func.func @transform_3(%arg0: i32, %arg1: i32) -> (i32, i32) {
    %c0_i32 = arith.constant 0 : i32
    %c0_i32_0 = arith.constant 0 : i32
    %c0_i32_1 = arith.constant 0 : i32
    return %c0_i32, %c0_i32_0 : i32, i32
  }
  func.func @transform_4(%arg0: i32, %arg1: i32) -> (i32, i32) {
    %c0_i32 = arith.constant 0 : i32
    %c0_i32_0 = arith.constant 0 : i32
    return %arg0, %c0_i32 : i32, i32
  }
}

</mosaic_0001>

<llo_original>
// kernel: _gcn_apply_bias.1
$region0: #{_gcn_apply_bias.1}
  #allocation0 [shape = 'u32[]', space=smem, size = 0x4, offset = 0x4, fixed_abs, tag = 'smem constant byte address 0x4 - core index']
  #allocation1 [shape = 'u32[144,128]{1,0:T(1,128)}', space=vmem, size = 0x12000, scoped, tag = 'internal scratch']
  %s0 = inlined_call_operand.vmem [shape: f32[128,128], index: 0, kind: input, shape index: {}]
  %s1 = inlined_call_operand.vmem [shape: bf16[128,128], index: 1, kind: input, shape index: {}]
  %s2 = inlined_call_operand.vmem [shape: bf16[128,128], index: 2, kind: input, shape index: {}]
  %s3 = inlined_call_operand.vmem [shape: f32[1,128], index: 3, kind: input, shape index: {}]
  %s4 = inlined_call_operand.vmem [shape: f32[128,128], index: 4, kind: output, shape index: {}]
  %s5 = sld [smem:[#allocation0]]
  $region26: #{_gcn_apply_bias.1} parent=0
    _
  %s7 = ssub.s32 1, %s5
  %s8 = scalar_select 0, %s7, %s5
  // Predicated region
  $region2: #{_gcn_apply_bias.1} parent=0 // pred_check
    _
  $region3: #{_gcn_apply_bias.1} parent=0 // pred_check_branch
    %10 = sbr.rel (0) target = $region5
  $region4: #{_gcn_apply_bias.1} parent=0 // pred_region
    _
  $region5: #{_gcn_apply_bias.1} parent=0 // pred_fallthru
    _
  // Predicated region
  $region6: #{_gcn_apply_bias.1} parent=0 // pred_check
    _
  $region7: #{_gcn_apply_bias.1} parent=0 // pred_check_branch
    %12 = sbr.rel (0) target = $region9
  $region8: #{_gcn_apply_bias.1} parent=0 // pred_region
    _
  $region9: #{_gcn_apply_bias.1} parent=0 // pred_fallthru
    _
  // Predicated region
  $region10: #{_gcn_apply_bias.1} parent=0 // pred_check
    _
  $region11: #{_gcn_apply_bias.1} parent=0 // pred_check_branch
    %14 = sbr.rel (0) target = $region13
  $region12: #{_gcn_apply_bias.1} parent=0 // pred_region
    _
  $region13: #{_gcn_apply_bias.1} parent=0 // pred_fallthru
    _
  // Predicated region
  $region14: #{_gcn_apply_bias.1} parent=0 // pred_check
    _
  $region15: #{_gcn_apply_bias.1} parent=0 // pred_check_branch
    %16 = sbr.rel (0) target = $region17
  $region16: #{_gcn_apply_bias.1} parent=0 // pred_region
    _
  $region17: #{_gcn_apply_bias.1} parent=0 // pred_fallthru
    _
  %v18 = vld [vmem:[%s0] sm:$0xff]
  %v19 = vld [vmem:[%s0 + $0x8] sm:$0xff]
  %v20 = vld [vmem:[%s0 + $0x10] sm:$0xff]
  %v21 = vld [vmem:[%s0 + $0x18] sm:$0xff]
  %v22 = vld [vmem:[%s0 + $0x20] sm:$0xff]
  %v23 = vld [vmem:[%s0 + $0x28] sm:$0xff]
  %v24 = vld [vmem:[%s0 + $0x30] sm:$0xff]
  %v25 = vld [vmem:[%s0 + $0x38] sm:$0xff]
  %v26 = vld [vmem:[%s0 + $0x40] sm:$0xff]
  %v27 = vld [vmem:[%s0 + $0x48] sm:$0xff]
  %v28 = vld [vmem:[%s0 + $0x50] sm:$0xff]
  %v29 = vld [vmem:[%s0 + $0x58] sm:$0xff]
  %v30 = vld [vmem:[%s0 + $0x60] sm:$0xff]
  %v31 = vld [vmem:[%s0 + $0x68] sm:$0xff]
  %v32 = vld [vmem:[%s0 + $0x70] sm:$0xff]
  %v33 = vld [vmem:[%s0 + $0x78] sm:$0xff]
  %v34 = vpack.c.bf16 %v19, %v18
  %v35 = vpack.c.bf16 %v21, %v20
  %v36 = vpack.c.bf16 %v23, %v22
  %v37 = vpack.c.bf16 %v25, %v24
  %v38 = vpack.c.bf16 %v27, %v26
  %v39 = vpack.c.bf16 %v29, %v28
  %v40 = vpack.c.bf16 %v31, %v30
  %v41 = vpack.c.bf16 %v33, %v32
  %v42 = vld [vmem:[%s1] sm:$0xf]
  %v43 = vld [vmem:[%s1 + $0x4] sm:$0xf]
  %v44 = vld [vmem:[%s1 + $0x8] sm:$0xf]
  %v45 = vld [vmem:[%s1 + $0xc] sm:$0xf]
  %v46 = vld [vmem:[%s1 + $0x10] sm:$0xf]
  %v47 = vld [vmem:[%s1 + $0x14] sm:$0xf]
  %v48 = vld [vmem:[%s1 + $0x18] sm:$0xf]
  %v49 = vld [vmem:[%s1 + $0x1c] sm:$0xf]
  %v50 = vld [vmem:[%s1 + $0x20] sm:$0xf]
  %v51 = vld [vmem:[%s1 + $0x24] sm:$0xf]
  %v52 = vld [vmem:[%s1 + $0x28] sm:$0xf]
  %v53 = vld [vmem:[%s1 + $0x2c] sm:$0xf]
  %v54 = vld [vmem:[%s1 + $0x30] sm:$0xf]
  %v55 = vld [vmem:[%s1 + $0x34] sm:$0xf]
  %v56 = vld [vmem:[%s1 + $0x38] sm:$0xf]
  %v57 = vld [vmem:[%s1 + $0x3c] sm:$0xf]
  %v58 = vld [vmem:[%s2] sm:$0xf]
  %v59 = vld [vmem:[%s2 + $0x4] sm:$0xf]
  %v60 = vld [vmem:[%s2 + $0x8] sm:$0xf]
  %v61 = vld [vmem:[%s2 + $0xc] sm:$0xf]
  %v62 = vld [vmem:[%s2 + $0x10] sm:$0xf]
  %v63 = vld [vmem:[%s2 + $0x14] sm:$0xf]
  %v64 = vld [vmem:[%s2 + $0x18] sm:$0xf]
  %v65 = vld [vmem:[%s2 + $0x1c] sm:$0xf]
  %v66 = vld [vmem:[%s2 + $0x20] sm:$0xf]
  %v67 = vld [vmem:[%s2 + $0x24] sm:$0xf]
  %v68 = vld [vmem:[%s2 + $0x28] sm:$0xf]
  %v69 = vld [vmem:[%s2 + $0x2c] sm:$0xf]
  %v70 = vld [vmem:[%s2 + $0x30] sm:$0xf]
  %v71 = vld [vmem:[%s2 + $0x34] sm:$0xf]
  %v72 = vld [vmem:[%s2 + $0x38] sm:$0xf]
  %v73 = vld [vmem:[%s2 + $0x3c] sm:$0xf]
  %v90 = vunpack.c.l.b16 %v42
  %v91 = vunpack.c.l.b16 %v43
  %v92 = vunpack.c.l.b16 %v44
  %v93 = vunpack.c.l.b16 %v45
  %v94 = vunpack.c.l.b16 %v46
  %v95 = vunpack.c.l.b16 %v47
  %v96 = vunpack.c.l.b16 %v48
  %v97 = vunpack.c.l.b16 %v49
  %v98 = vunpack.c.l.b16 %v50
  %v99 = vunpack.c.l.b16 %v51
  %v100 = vunpack.c.l.b16 %v52
  %v101 = vunpack.c.l.b16 %v53
  %v102 = vunpack.c.l.b16 %v54
  %v103 = vunpack.c.l.b16 %v55
  %v104 = vunpack.c.l.b16 %v56
  %v105 = vunpack.c.l.b16 %v57
  %v106 = vpack.c.b16 %v91, %v90
  %v107 = vpack.c.b16 %v93, %v92
  %v108 = vpack.c.b16 %v95, %v94
  %v109 = vpack.c.b16 %v97, %v96
  %v110 = vpack.c.b16 %v99, %v98
  %v111 = vpack.c.b16 %v101, %v100
  %v112 = vpack.c.b16 %v103, %v102
  %v113 = vpack.c.b16 %v105, %v104
  %v138 = vunpack.c.l.b16 %v58
  %v139 = vunpack.c.l.b16 %v59
  %v140 = vunpack.c.l.b16 %v60
  %v141 = vunpack.c.l.b16 %v61
  %v142 = vunpack.c.l.b16 %v62
  %v143 = vunpack.c.l.b16 %v63
  %v144 = vunpack.c.l.b16 %v64
  %v145 = vunpack.c.l.b16 %v65
  %v146 = vunpack.c.l.b16 %v66
  %v147 = vunpack.c.l.b16 %v67
  %v148 = vunpack.c.l.b16 %v68
  %v149 = vunpack.c.l.b16 %v69
  %v150 = vunpack.c.l.b16 %v70
  %v151 = vunpack.c.l.b16 %v71
  %v152 = vunpack.c.l.b16 %v72
  %v153 = vunpack.c.l.b16 %v73
  %v154 = vpack.c.b16 %v139, %v138
  %v155 = vpack.c.b16 %v141, %v140
  %v156 = vpack.c.b16 %v143, %v142
  %v157 = vpack.c.b16 %v145, %v144
  %v158 = vpack.c.b16 %v147, %v146
  %v159 = vpack.c.b16 %v149, %v148
  %v160 = vpack.c.b16 %v151, %v150
  %v161 = vpack.c.b16 %v153, %v152
  %170 = vmatprep.subr.bf16.mxu0 0
  %171 = vmatpush1.bf16.msra.mxu0 %v154
  %172 = vmatprep.subr.bf16.mxu0 0
  %173 = vmatpush1.bf16.msra.mxu0 %v155
  %174 = vmatprep.subr.bf16.mxu0 0
  %175 = vmatpush1.bf16.msra.mxu0 %v156
  %176 = vmatprep.subr.bf16.mxu0 0
  %177 = vmatpush1.bf16.msra.mxu0 %v157
  %178 = vmatprep.subr.bf16.mxu0 0
  %179 = vmatpush1.bf16.msra.mxu0 %v158
  %180 = vmatprep.subr.bf16.mxu0 0
  %181 = vmatpush1.bf16.msra.mxu0 %v159
  %182 = vmatprep.subr.bf16.mxu0 0
  %183 = vmatpush1.bf16.msra.mxu0 %v160
  %184 = vmatprep.subr.bf16.mxu0 0
  %185 = vmatpush1.bf16.msra.mxu0 %v161
  %186 = vmatprep.subr.bf16.mxu0 0
  %187 = vmatpush1.bf16.msra.mxu0 0
  %188 = vmatprep.subr.bf16.mxu0 0
  %189 = vmatpush1.bf16.msra.mxu0 0
  %190 = vmatprep.subr.bf16.mxu0 0
  %191 = vmatpush1.bf16.msra.mxu0 0
  %192 = vmatprep.subr.bf16.mxu0 0
  %193 = vmatpush1.bf16.msra.mxu0 0
  %194 = vmatprep.subr.bf16.mxu0 0
  %195 = vmatpush1.bf16.msra.mxu0 0
  %196 = vmatprep.subr.bf16.mxu0 0
  %197 = vmatpush1.bf16.msra.mxu0 0
  %198 = vmatprep.subr.bf16.mxu0 0
  %199 = vmatpush1.bf16.msra.mxu0 0
  %200 = vmatprep.subr.bf16.mxu0 0
  %201 = vmatpush1.bf16.msra.mxu0 0
  %202 = vmatprep.mubr.bf16.mxu0 0
  %203 = vmatmul.mubr.bf16.gmra.mrb[0].mxu0 %v106
  %v204 = vpop.f32.mrb[0].mxu0
  %v205 = vadd.f32 0.0, %v204
  %v206 = vpop.f32.mrb[0].mxu0
  %v207 = vpop.f32.mrb[0].mxu0
  %v208 = vadd.f32 0.0, %v207
  %v209 = vpop.f32.mrb[0].mxu0
  %210 = vmatprep.mubr.bf16.mxu0 0
  %211 = vmatmul.mubr.bf16.gmra.mrb[0].mxu0 %v107
  %v212 = vpop.f32.mrb[0].mxu0
  %v213 = vadd.f32 0.0, %v212
  %v214 = vpop.f32.mrb[0].mxu0
  %v215 = vpop.f32.mrb[0].mxu0
  %v216 = vadd.f32 0.0, %v215
  %v217 = vpop.f32.mrb[0].mxu0
  %218 = vmatprep.mubr.bf16.mxu0 0
  %219 = vmatmul.mubr.bf16.gmra.mrb[0].mxu0 %v108
  %v220 = vpop.f32.mrb[0].mxu0
  %v221 = vadd.f32 0.0, %v220
  %v222 = vpop.f32.mrb[0].mxu0
  %v223 = vpop.f32.mrb[0].mxu0
  %v224 = vadd.f32 0.0, %v223
  %v225 = vpop.f32.mrb[0].mxu0
  %226 = vmatprep.mubr.bf16.mxu0 0
  %227 = vmatmul.mubr.bf16.gmra.mrb[0].mxu0 %v109
  %v228 = vpop.f32.mrb[0].mxu0
  %v229 = vadd.f32 0.0, %v228
  %v230 = vpop.f32.mrb[0].mxu0
  %v231 = vpop.f32.mrb[0].mxu0
  %v232 = vadd.f32 0.0, %v231
  %v233 = vpop.f32.mrb[0].mxu0
  %234 = vmatprep.mubr.bf16.mxu0 0
  %235 = vmatmul.mubr.bf16.gmra.mrb[0].mxu0 %v110
  %v236 = vpop.f32.mrb[0].mxu0
  %v237 = vadd.f32 0.0, %v236
  %v238 = vpop.f32.mrb[0].mxu0
  %v239 = vpop.f32.mrb[0].mxu0
  %v240 = vadd.f32 0.0, %v239
  %v241 = vpop.f32.mrb[0].mxu0
  %242 = vmatprep.mubr.bf16.mxu0 0
  %243 = vmatmul.mubr.bf16.gmra.mrb[0].mxu0 %v111
  %v244 = vpop.f32.mrb[0].mxu0
  %v245 = vadd.f32 0.0, %v244
  %v246 = vpop.f32.mrb[0].mxu0
  %v247 = vpop.f32.mrb[0].mxu0
  %v248 = vadd.f32 0.0, %v247
  %v249 = vpop.f32.mrb[0].mxu0
  %250 = vmatprep.mubr.bf16.mxu0 0
  %251 = vmatmul.mubr.bf16.gmra.mrb[0].mxu0 %v112
  %v252 = vpop.f32.mrb[0].mxu0
  %v253 = vadd.f32 0.0, %v252
  %v254 = vpop.f32.mrb[0].mxu0
  %v255 = vpop.f32.mrb[0].mxu0
  %v256 = vadd.f32 0.0, %v255
  %v257 = vpop.f32.mrb[0].mxu0
  %258 = vmatprep.mubr.bf16.mxu0 0
  %259 = vmatmul.mubr.bf16.gmra.mrb[0].mxu0 %v113
  %v260 = vpop.f32.mrb[0].mxu0
  %v261 = vadd.f32 0.0, %v260
  %v262 = vpop.f32.mrb[0].mxu0
  %v263 = vpop.f32.mrb[0].mxu0
  %v264 = vadd.f32 0.0, %v263
  %v265 = vpop.f32.mrb[0].mxu0
  %266 = vdwg.mxu0
  %v267 = vpack.c.bf16 %v208, %v205
  %v268 = vpack.c.bf16 %v216, %v213
  %v269 = vpack.c.bf16 %v224, %v221
  %v270 = vpack.c.bf16 %v232, %v229
  %v271 = vpack.c.bf16 %v240, %v237
  %v272 = vpack.c.bf16 %v248, %v245
  %v273 = vpack.c.bf16 %v256, %v253
  %v274 = vpack.c.bf16 %v264, %v261
  %v275 = vld [vmem:[%s3] sm:$0x1]
  %v277 = vlaneseq
  %v278 = vshrl.u32 %v277, 7
  %v279 = vsub.s32 0, %v278
  %v280 = vrot.slane %v275, %v279
  %282 = vmatprep.subr.bf16.mxu0 0
  %283 = vmatpush1.bf16.msra.mxu0 %v267
  %284 = vmatprep.subr.bf16.mxu0 0
  %285 = vmatpush1.bf16.msra.mxu0 %v268
  %286 = vmatprep.subr.bf16.mxu0 0
  %287 = vmatpush1.bf16.msra.mxu0 %v269
  %288 = vmatprep.subr.bf16.mxu0 0
  %289 = vmatpush1.bf16.msra.mxu0 %v270
  %290 = vmatprep.subr.bf16.mxu0 0
  %291 = vmatpush1.bf16.msra.mxu0 %v271
  %292 = vmatprep.subr.bf16.mxu0 0
  %293 = vmatpush1.bf16.msra.mxu0 %v272
  %294 = vmatprep.subr.bf16.mxu0 0
  %295 = vmatpush1.bf16.msra.mxu0 %v273
  %296 = vmatprep.subr.bf16.mxu0 0
  %297 = vmatpush1.bf16.msra.mxu0 %v274
  %298 = vmatprep.subr.bf16.mxu0 0
  %299 = vmatpush1.bf16.msra.mxu0 0
  %300 = vmatprep.subr.bf16.mxu0 0
  %301 = vmatpush1.bf16.msra.mxu0 0
  %302 = vmatprep.subr.bf16.mxu0 0
  %303 = vmatpush1.bf16.msra.mxu0 0
  %304 = vmatprep.subr.bf16.mxu0 0
  %305 = vmatpush1.bf16.msra.mxu0 0
  %306 = vmatprep.subr.bf16.mxu0 0
  %307 = vmatpush1.bf16.msra.mxu0 0
  %308 = vmatprep.subr.bf16.mxu0 0
  %309 = vmatpush1.bf16.msra.mxu0 0
  %310 = vmatprep.subr.bf16.mxu0 0
  %311 = vmatpush1.bf16.msra.mxu0 0
  %312 = vmatprep.subr.bf16.mxu0 0
  %313 = vmatpush1.bf16.msra.mxu0 0
  %314 = vmatprep.mubr.bf16.mxu0 0
  %315 = vmatmul.mubr.bf16.gmra.mrb[0].mxu0 %v34
  %v316 = vpop.f32.mrb[0].mxu0
  %v317 = vadd.f32 %v280, %v316
  %v318 = vpop.f32.mrb[0].mxu0
  %v319 = vpop.f32.mrb[0].mxu0
  %v320 = vadd.f32 %v280, %v319
  %v321 = vpop.f32.mrb[0].mxu0
  %322 = vmatprep.mubr.bf16.mxu0 0
  %323 = vmatmul.mubr.bf16.gmra.mrb[0].mxu0 %v35
  %v324 = vpop.f32.mrb[0].mxu0
  %v325 = vadd.f32 %v280, %v324
  %v326 = vpop.f32.mrb[0].mxu0
  %v327 = vpop.f32.mrb[0].mxu0
  %v328 = vadd.f32 %v280, %v327
  %v329 = vpop.f32.mrb[0].mxu0
  %330 = vmatprep.mubr.bf16.mxu0 0
  %331 = vmatmul.mubr.bf16.gmra.mrb[0].mxu0 %v36
  %v332 = vpop.f32.mrb[0].mxu0
  %v333 = vadd.f32 %v280, %v332
  %v334 = vpop.f32.mrb[0].mxu0
  %v335 = vpop.f32.mrb[0].mxu0
  %v336 = vadd.f32 %v280, %v335
  %v337 = vpop.f32.mrb[0].mxu0
  %338 = vmatprep.mubr.bf16.mxu0 0
  %339 = vmatmul.mubr.bf16.gmra.mrb[0].mxu0 %v37
  %v340 = vpop.f32.mrb[0].mxu0
  %v341 = vadd.f32 %v280, %v340
  %v342 = vpop.f32.mrb[0].mxu0
  %v343 = vpop.f32.mrb[0].mxu0
  %v344 = vadd.f32 %v280, %v343
  %v345 = vpop.f32.mrb[0].mxu0
  %346 = vmatprep.mubr.bf16.mxu0 0
  %347 = vmatmul.mubr.bf16.gmra.mrb[0].mxu0 %v38
  %v348 = vpop.f32.mrb[0].mxu0
  %v349 = vadd.f32 %v280, %v348
  %v350 = vpop.f32.mrb[0].mxu0
  %v351 = vpop.f32.mrb[0].mxu0
  %v352 = vadd.f32 %v280, %v351
  %v353 = vpop.f32.mrb[0].mxu0
  %354 = vmatprep.mubr.bf16.mxu0 0
  %355 = vmatmul.mubr.bf16.gmra.mrb[0].mxu0 %v39
  %v356 = vpop.f32.mrb[0].mxu0
  %v357 = vadd.f32 %v280, %v356
  %v358 = vpop.f32.mrb[0].mxu0
  %v359 = vpop.f32.mrb[0].mxu0
  %v360 = vadd.f32 %v280, %v359
  %v361 = vpop.f32.mrb[0].mxu0
  %362 = vmatprep.mubr.bf16.mxu0 0
  %363 = vmatmul.mubr.bf16.gmra.mrb[0].mxu0 %v40
  %v364 = vpop.f32.mrb[0].mxu0
  %v365 = vadd.f32 %v280, %v364
  %v366 = vpop.f32.mrb[0].mxu0
  %v367 = vpop.f32.mrb[0].mxu0
  %v368 = vadd.f32 %v280, %v367
  %v369 = vpop.f32.mrb[0].mxu0
  %370 = vmatprep.mubr.bf16.mxu0 0
  %371 = vmatmul.mubr.bf16.gmra.mrb[0].mxu0 %v41
  %v372 = vpop.f32.mrb[0].mxu0
  %v373 = vadd.f32 %v280, %v372
  %v374 = vpop.f32.mrb[0].mxu0
  %v375 = vpop.f32.mrb[0].mxu0
  %v376 = vadd.f32 %v280, %v375
  %v377 = vpop.f32.mrb[0].mxu0
  %378 = vdwg.mxu0
  %379 = vst [vmem:[%s4] sm:$0xff] %v317
  %380 = vst [vmem:[%s4 + $0x8] sm:$0xff] %v320
  %381 = vst [vmem:[%s4 + $0x10] sm:$0xff] %v325
  %382 = vst [vmem:[%s4 + $0x18] sm:$0xff] %v328
  %383 = vst [vmem:[%s4 + $0x20] sm:$0xff] %v333
  %384 = vst [vmem:[%s4 + $0x28] sm:$0xff] %v336
  %385 = vst [vmem:[%s4 + $0x30] sm:$0xff] %v341
  %386 = vst [vmem:[%s4 + $0x38] sm:$0xff] %v344
  %387 = vst [vmem:[%s4 + $0x40] sm:$0xff] %v349
  %388 = vst [vmem:[%s4 + $0x48] sm:$0xff] %v352
  %389 = vst [vmem:[%s4 + $0x50] sm:$0xff] %v357
  %390 = vst [vmem:[%s4 + $0x58] sm:$0xff] %v360
  %391 = vst [vmem:[%s4 + $0x60] sm:$0xff] %v365
  %392 = vst [vmem:[%s4 + $0x68] sm:$0xff] %v368
  %393 = vst [vmem:[%s4 + $0x70] sm:$0xff] %v373
  %394 = vst [vmem:[%s4 + $0x78] sm:$0xff] %v376
  // Predicated region
  $region18: #{_gcn_apply_bias.1} parent=0 // pred_check
    _
  $region19: #{_gcn_apply_bias.1} parent=0 // pred_check_branch
    %396 = sbr.rel (0) target = $region21
  $region20: #{_gcn_apply_bias.1} parent=0 // pred_region
    _
  $region21: #{_gcn_apply_bias.1} parent=0 // pred_fallthru
    _
  // Predicated region
  $region22: #{_gcn_apply_bias.1} parent=0 // pred_check
    _
  $region23: #{_gcn_apply_bias.1} parent=0 // pred_check_branch
    %398 = sbr.rel (0) target = $region25
  $region24: #{_gcn_apply_bias.1} parent=0 // pred_region
    _
  $region25: #{_gcn_apply_bias.1} parent=0 // pred_fallthru
    _

</llo_original>
